<compile_context>
chip_gen: v5e
topology: v5e:2x2
jax: 0.10.0
libtpu: 0.0.40
codegen_flags: <defaults>
</compile_context>

<pallas_src>
import jax
import jax.numpy as jnp
from jax.experimental import pallas as pl
from jax.experimental.pallas import tpu as pltpu

GROUPS = 8
EPS = 1e-5


def _make_sideout_kernel(Cin, Cmid, Cout, HW, groups, b_blk):
    gsz = Cmid // groups
    inv_cnt = 1.0 / float(HW * gsz)

    def kernel(x_ref, w1_ref, gb_ref, w2_ref, b2_ref, o_ref):
        # x_ref  : (b_blk, 9*Cin, HW)   im2col'd input columns (valid positions only)
        # w1_ref : (Cmid, 9*Cin)        3x3 conv weight, tap-major / channel-minor columns
        # gb_ref : (2*Cmid, 1)          [gamma ; beta] packed on sublanes
        # w2_ref : (Cmid, Cout)         1x1 conv weight (one column per output channel)
        # b2_ref : (Cout,)  in SMEM     1x1 conv bias
        # o_ref  : (b_blk, Cout, HW)    lane-dense output
        w1 = w1_ref[...]                                  # hoisted across images
        gamma = gb_ref[pl.ds(0, Cmid), :]                 # (Cmid, 1)
        beta = gb_ref[pl.ds(Cmid, Cmid), :]               # (Cmid, 1)

        if gsz > 1:  # group-combine matrix (dead at trace time here: gsz == 1)
            r = jax.lax.broadcasted_iota(jnp.int32, (Cmid, Cmid), 0) // gsz
            c = jax.lax.broadcasted_iota(jnp.int32, (Cmid, Cmid), 1) // gsz
            gmat = (r == c).astype(jnp.float32)

        for b in range(b_blk):  # static unroll; b_blk is tiny (1 at default config)
            # ---- conv3x3: single lane-aligned (Cmid, 9*Cin) @ (9*Cin, HW) MXU matmul ----
            acc = jnp.dot(w1, x_ref[b], preferred_element_type=jnp.float32)   # (Cmid, HW)

            # ---- GroupNorm(groups): per-image stats, two-pass variance ----
            ch_sum = jnp.sum(acc, axis=1, keepdims=True)                       # (Cmid, 1)
            if gsz > 1:
                ch_sum = jnp.dot(gmat, ch_sum, preferred_element_type=jnp.float32)
            mean = ch_sum * inv_cnt
            d = acc - mean
            ch_var = jnp.sum(d * d, axis=1, keepdims=True)                     # (Cmid, 1)
            if gsz > 1:
                ch_var = jnp.dot(gmat, ch_var, preferred_element_type=jnp.float32)
            inv = jax.lax.rsqrt(ch_var * inv_cnt + EPS)

            # folded affine + ReLU:  y = max(acc * scale + shift, 0)
            scale = inv * gamma
            shift = beta - mean * scale
            y = jnp.maximum(acc * scale + shift, 0.0)                          # (Cmid, HW)

            # TODO(synk): Dropout2d(0.1) is identity in eval mode; training-mode per-channel
            # dropout is not implemented here.

            # ---- conv1x1 + bias ----
            if Cout < 8:
                # VPU broadcast-FMA + sublane (XLU) reduce: an M<8 matmul would leave the MXU
                # <1% utilized and pay result-FIFO pop latency on v5e/v6e.
                rows = []
                for oc in range(Cout):
                    wcol = w2_ref[:, pl.ds(oc, 1)]                             # (Cmid, 1)
                    rows.append(jnp.sum(y * wcol, axis=0, keepdims=True) + b2_ref[oc])
                out = rows[0] if Cout == 1 else jnp.concatenate(rows, axis=0)
            else:
                out = jax.lax.dot_general(
                    w2_ref[...], y, (((0,), (0,)), ((), ())),
                    preferred_element_type=jnp.float32)                        # (Cout, HW)
                bias = jnp.concatenate(
                    [jnp.full((1, HW), b2_ref[oc], jnp.float32) for oc in range(Cout)],
                    axis=0)
                out = out + bias

            o_ref[b] = out.astype(o_ref.dtype)

    return kernel


def sideout_block(x_nchw, w1_oihw, gamma, beta, w2_oihw, b2, num_blocks=None):
    """Forward pass of SideoutBlock (eval mode). x_nchw: (N, Cin, H, W) float32."""
    N, Cin, H, W = x_nchw.shape
    Cmid = w1_oihw.shape[0]
    Cout = w2_oihw.shape[0]
    assert Cmid % GROUPS == 0, "GroupNorm(8) requires mid channels divisible by 8"
    HW = H * W

    # Grid blocking: 2-way "parallel" split (one TC each on v7x); set num_blocks=1 on
    # single-TC v5e/v6e to fold the whole batch into one step.
    if num_blocks is None:
        num_blocks = 2 if (N >= 2 and N % 2 == 0) else 1
    assert N % num_blocks == 0
    b_blk = N // num_blocks

    # ---- im2col-lite in the wrapper (valid output positions only, tap-major rows) ----
    xp = jnp.pad(x_nchw, ((0, 0), (0, 0), (1, 1), (1, 1)))            # (N, Cin, H+2, W+2)
    taps = [xp[:, :, dy:dy + H, dx:dx + W].reshape(N, Cin, HW)
            for dy in range(3) for dx in range(3)]
    x_cols = jnp.concatenate(taps, axis=1)                            # (N, 9*Cin, HW)

    # conv1 weight OIHW -> (Cmid, 9*Cin) lane-dense, columns tap-major / channel-minor
    w1_mat = jnp.transpose(w1_oihw, (0, 2, 3, 1)).reshape(Cmid, 9 * Cin)
    gb = jnp.concatenate([gamma.reshape(Cmid, 1), beta.reshape(Cmid, 1)], axis=0)  # (2*Cmid,1)
    w2_mat = w2_oihw.reshape(Cout, Cmid).T                            # (Cmid, Cout)
    b2_vec = b2.reshape(Cout).astype(jnp.float32)

    kernel = _make_sideout_kernel(Cin, Cmid, Cout, HW, GROUPS, b_blk)

    out_cols = pl.pallas_call(
        kernel,
        out_shape=jax.ShapeDtypeStruct((N, Cout, HW), jnp.float32),
        grid_spec=pltpu.PrefetchScalarGridSpec(
            num_scalar_prefetch=0,
            grid=(num_blocks,),
            in_specs=[
                pl.BlockSpec((b_blk, 9 * Cin, HW), lambda g: (g, 0, 0)),
                pl.BlockSpec((Cmid, 9 * Cin), lambda g: (0, 0)),
                pl.BlockSpec((2 * Cmid, 1), lambda g: (0, 0)),
                pl.BlockSpec((Cmid, Cout), lambda g: (0, 0)),
                pl.BlockSpec(memory_space=pltpu.MemorySpace.SMEM),
            ],
            out_specs=pl.BlockSpec((b_blk, Cout, HW), lambda g: (g, 0, 0)),
        ),
        compiler_params=pltpu.CompilerParams(
            dimension_semantics=("parallel",)),
    )(x_cols, w1_mat, gb, w2_mat, b2_vec)

    return out_cols.reshape(N, Cout, H, W)


def sideout_reference(x_nchw, w1_oihw, gamma, beta, w2_oihw, b2):
    """Pure-JAX NCHW reference mirroring the PyTorch module (eval mode)."""
    y = jax.lax.conv_general_dilated(
        x_nchw, w1_oihw, (1, 1), ((1, 1), (1, 1)),
        dimension_numbers=("NCHW", "OIHW", "NCHW"))
    N, C, H, W = y.shape
    yg = y.reshape(N, GROUPS, C // GROUPS, H, W)
    mean = yg.mean(axis=(2, 3, 4), keepdims=True)
    var = ((yg - mean) ** 2).mean(axis=(2, 3, 4), keepdims=True)
    y = ((yg - mean) / jnp.sqrt(var + EPS)).reshape(N, C, H, W)
    y = y * gamma[None, :, None, None] + beta[None, :, None, None]
    y = jnp.maximum(y, 0.0)
    out = jax.lax.conv_general_dilated(
        y, w2_oihw, (1, 1), "VALID",
        dimension_numbers=("NCHW", "OIHW", "NCHW"))
    return out + b2[None, :, None, None]


if __name__ == "__main__":
    # SideoutBlock(in_channels=32, out_channels=1): conv1 -> 32//4 = 8 mid channels (GroupNorm(8))
    N, Cin, H, W = 2, 32, 16, 16
    Cmid, Cout = Cin // 4, 1

    key = jax.random.PRNGKey(0)
    k0, k1, k2, k3, k4, k5 = jax.random.split(key, 6)
    x = jax.random.normal(k0, (N, Cin, H, W), dtype=jnp.float32)
    w1 = jax.random.normal(k1, (Cmid, Cin, 3, 3), dtype=jnp.float32) * 0.1   # conv1 (no bias)
    gamma = 1.0 + 0.1 * jax.random.normal(k2, (Cmid,), dtype=jnp.float32)    # GroupNorm weight
    beta = 0.1 * jax.random.normal(k3, (Cmid,), dtype=jnp.float32)           # GroupNorm bias
    w2 = jax.random.normal(k4, (Cout, Cmid, 1, 1), dtype=jnp.float32) * 0.1  # conv2 weight
    b2 = 0.1 * jax.random.normal(k5, (Cout,), dtype=jnp.float32)             # conv2 bias

    out = sideout_block(x, w1, gamma, beta, w2, b2)
    jax.block_until_ready(out)

    ref = sideout_reference(x, w1, gamma, beta, w2, b2)
    assert out.shape == (N, Cout, H, W), out.shape
    assert jnp.allclose(out, ref, rtol=1e-4, atol=1e-4), \
        float(jnp.max(jnp.abs(out - ref)))

    print("KERNEL_OK")
</pallas_src>

<mosaic_0001>
module attributes {stable_mosaic.version = 11 : i64} {
  func.func @kernel(%arg0: i32, %arg1: memref<1x288x256xf32, #tpu.memory_space<vmem>>, %arg2: memref<8x288xf32, #tpu.memory_space<vmem>>, %arg3: memref<16x1xf32, #tpu.memory_space<vmem>>, %arg4: memref<8x1xf32, #tpu.memory_space<vmem>>, %arg5: memref<1xf32, #tpu.memory_space<smem>>, %arg6: memref<1x1x256xf32, #tpu.memory_space<vmem>>) attributes {dimension_semantics = [#tpu.dimension_semantics<parallel>], iteration_bounds = array<i64: 2>, scalar_prefetch = 0 : i64, scratch_operands = 0 : i64, tpu.core_type = #tpu.core_type<tc>, window_params = [{transform_indices = @transform_0, window_bounds = array<i64: 1, 288, 256>}, {pipeline_mode = #tpu.pipeline_mode<synchronous>, transform_indices = @transform_1, window_bounds = array<i64: 8, 288>}, {pipeline_mode = #tpu.pipeline_mode<synchronous>, transform_indices = @transform_2, window_bounds = array<i64: 16, 1>}, {pipeline_mode = #tpu.pipeline_mode<synchronous>, transform_indices = @transform_3, window_bounds = array<i64: 8, 1>}, {transform_indices = @transform_4, window_bounds = array<i64: 1>}, {transform_indices = @transform_5, window_bounds = array<i64: 1, 1, 256>}]} {
    %c0 = arith.constant 0 : index
    %c0_0 = arith.constant 0 : index
    %0 = vector.load %arg2[%c0, %c0_0] : memref<8x288xf32, #tpu.memory_space<vmem>>, vector<8x288xf32>
    %c0_1 = arith.constant 0 : index
    %c0_2 = arith.constant 0 : index
    %1 = vector.load %arg3[%c0_1, %c0_2] : memref<16x1xf32, #tpu.memory_space<vmem>>, vector<8x1xf32>
    %c8 = arith.constant 8 : index
    %c0_3 = arith.constant 0 : index
    %2 = vector.load %arg3[%c8, %c0_3] : memref<16x1xf32, #tpu.memory_space<vmem>>, vector<8x1xf32>
    %c0_4 = arith.constant 0 : index
    %c0_5 = arith.constant 0 : index
    %c0_6 = arith.constant 0 : index
    %3 = vector.load %arg1[%c0_4, %c0_5, %c0_6] : memref<1x288x256xf32, #tpu.memory_space<vmem>>, vector<1x288x256xf32>
    %4 = vector.shape_cast %3 : vector<1x288x256xf32> to vector<288x256xf32>
    %cst = arith.constant dense<0.000000e+00> : vector<8x256xf32>
    %5 = tpu.matmul %0, %4, %cst {dimension_numbers = #tpu.dot_dimension_numbers<[1], [0], [0], [1], [0, 0, 1, 1], [], []>} : vector<8x288xf32>, vector<288x256xf32>, vector<8x256xf32> -> vector<8x256xf32>
    %cst_7 = arith.constant dense<0.000000e+00> : vector<8xf32>
    %6 = vector.multi_reduction <add>, %5, %cst_7 [1] : vector<8x256xf32> to vector<8xf32>
    %7 = vector.shape_cast %6 : vector<8xf32> to vector<8x1xf32>
    %cst_8 = arith.constant 3.906250e-03 : f32
    %8 = vector.broadcast %cst_8 : f32 to vector<8x1xf32>
    %9 = arith.mulf %7, %8 : vector<8x1xf32>
    %10 = vector.broadcast %9 : vector<8x1xf32> to vector<8x256xf32>
    %11 = arith.subf %5, %10 : vector<8x256xf32>
    %12 = arith.mulf %11, %11 : vector<8x256xf32>
    %cst_9 = arith.constant dense<0.000000e+00> : vector<8xf32>
    %13 = vector.multi_reduction <add>, %12, %cst_9 [1] : vector<8x256xf32> to vector<8xf32>
    %14 = vector.shape_cast %13 : vector<8xf32> to vector<8x1xf32>
    %cst_10 = arith.constant 3.906250e-03 : f32
    %15 = vector.broadcast %cst_10 : f32 to vector<8x1xf32>
    %16 = arith.mulf %14, %15 : vector<8x1xf32>
    %cst_11 = arith.constant 9.99999974E-6 : f32
    %17 = vector.broadcast %cst_11 : f32 to vector<8x1xf32>
    %18 = arith.addf %16, %17 : vector<8x1xf32>
    %19 = math.rsqrt %18 : vector<8x1xf32>
    %20 = arith.mulf %19, %1 : vector<8x1xf32>
    %21 = arith.mulf %9, %20 : vector<8x1xf32>
    %22 = arith.subf %2, %21 : vector<8x1xf32>
    %23 = vector.broadcast %20 : vector<8x1xf32> to vector<8x256xf32>
    %24 = arith.mulf %5, %23 : vector<8x256xf32>
    %25 = vector.broadcast %22 : vector<8x1xf32> to vector<8x256xf32>
    %26 = arith.addf %24, %25 : vector<8x256xf32>
    %cst_12 = arith.constant 0.000000e+00 : f32
    %27 = vector.broadcast %cst_12 : f32 to vector<8x256xf32>
    %28 = arith.maximumf %26, %27 : vector<8x256xf32>
    %c0_13 = arith.constant 0 : index
    %c0_14 = arith.constant 0 : index
    %29 = vector.load %arg4[%c0_13, %c0_14] : memref<8x1xf32, #tpu.memory_space<vmem>>, vector<8x1xf32>
    %30 = vector.broadcast %29 : vector<8x1xf32> to vector<8x256xf32>
    %31 = arith.mulf %28, %30 : vector<8x256xf32>
    %cst_15 = arith.constant dense<0.000000e+00> : vector<256xf32>
    %32 = vector.multi_reduction <add>, %31, %cst_15 [0] : vector<8x256xf32> to vector<256xf32>
    %33 = vector.shape_cast %32 : vector<256xf32> to vector<1x256xf32>
    %c0_16 = arith.constant 0 : index
    %34 = memref.load %arg5[%c0_16] : memref<1xf32, #tpu.memory_space<smem>>
    %35 = vector.broadcast %34 : f32 to vector<1x256xf32>
    %36 = arith.addf %33, %35 : vector<1x256xf32>
    %c0_17 = arith.constant 0 : index
    %c0_18 = arith.constant 0 : index
    %c0_19 = arith.constant 0 : index
    %37 = vector.load %arg6[%c0_17, %c0_18, %c0_19] : memref<1x1x256xf32, #tpu.memory_space<vmem>>, vector<1x1x256xf32>
    %38 = vector.shape_cast %37 : vector<1x1x256xf32> to vector<1x256xf32>
    %39 = vector.shape_cast %36 : vector<1x256xf32> to vector<1x1x256xf32>
    tpu.vector_store %arg6[%c0_17, %c0_18, %c0_19], %39 {strides = array<i32>} : memref<1x1x256xf32, #tpu.memory_space<vmem>>, vector<1x1x256xf32>,
    return
  }
  func.func @transform_0(%arg0: i32) -> (i32, i32, i32) {
    %c0_i32 = arith.constant 0 : i32
    %c0_i32_0 = arith.constant 0 : i32
    %c0_i32_1 = arith.constant 0 : i32
    return %arg0, %c0_i32, %c0_i32_0 : i32, i32, i32
  }
  func.func @transform_1(%arg0: i32) -> (i32, i32) {
    %c0_i32 = arith.constant 0 : i32
    %c0_i32_0 = arith.constant 0 : i32
    %c0_i32_1 = arith.constant 0 : i32
    return %c0_i32, %c0_i32_0 : i32, i32
  }
  func.func @transform_2(%arg0: i32) -> (i32, i32) {
    %c0_i32 = arith.constant 0 : i32
    %c0_i32_0 = arith.constant 0 : i32
    %c0_i32_1 = arith.constant 0 : i32
    return %c0_i32, %c0_i32_0 : i32, i32
  }
  func.func @transform_3(%arg0: i32) -> (i32, i32) {
    %c0_i32 = arith.constant 0 : i32
    %c0_i32_0 = arith.constant 0 : i32
    %c0_i32_1 = arith.constant 0 : i32
    return %c0_i32, %c0_i32_0 : i32, i32
  }
  func.func @transform_4(%arg0: i32) -> i32 {
    %c0_i32 = arith.constant 0 : i32
    %c0_i32_0 = arith.constant 0 : i32
    return %c0_i32 : i32
  }
  func.func @transform_5(%arg0: i32) -> (i32, i32, i32) {
    %c0_i32 = arith.constant 0 : i32
    %c0_i32_0 = arith.constant 0 : i32
    %c0_i32_1 = arith.constant 0 : i32
    return %arg0, %c0_i32, %c0_i32_0 : i32, i32, i32
  }
}

</mosaic_0001>

<llo_original>
// kernel: tpu_custom_call.1
$region0: #{tpu_custom_call.1}
  #allocation0 [shape = 'u32[]', space=smem, size = 0x4, offset = 0x4, fixed_abs, tag = 'smem constant byte address 0x4 - core index']
  #allocation1 [shape = 'u32[72,128]{1,0:T(1,128)}', space=vmem, size = 0x9000, scoped, tag = 'internal scratch']
  #allocation2 [shape = 'f32[1]{0:T(128)S(6)}', space=smem, size = 0x200, scoped, tag = 'scoped memory for tpu_custom_call.1']
  %s0 = inlined_call_operand.hbm [shape: f32[2,288,256], index: 0, kind: input, shape index: {}]
  %s1 = inlined_call_operand.vmem [shape: f32[8,288], index: 1, kind: input, shape index: {}]
  %s2 = inlined_call_operand.vmem [shape: f32[16,1], index: 2, kind: input, shape index: {}]
  %s3 = inlined_call_operand.vmem [shape: f32[8,1], index: 3, kind: input, shape index: {}]
  %s4 = inlined_call_operand.<no memory space> [shape: f32[1], index: 4, kind: input, shape index: {}]
  %s5 = inlined_call_operand.hbm [shape: f32[2,1,256], index: 5, kind: output, shape index: {}]
  %s6 = sld [smem:[#allocation0]]
  $region57: #{tpu_custom_call.1} parent=0
    _
  %s8 = ssub.s32 1, %s6
  %s9 = scalar_select 0, %s8, %s6
  %10 = sst [smem:[#allocation2]] %s4
  $region1: #{tpu_custom_call.1} parent=0
    #allocation3 [shape = 'u8[589824]{0}', space=vmem, size = 0x90000, scoped, tag = 'input window, operand 0']
    #allocation4 [shape = 's32[2]{0}', space=sflag, size = 0x8, scoped, tag = 'scoped memory for tpu_custom_call.1']
    #allocation5 [shape = 's32[2]{0}', space=sflag, size = 0x8, scoped, tag = 'scoped memory for tpu_custom_call.1']
    #allocation6 [shape = 'u8[2048]{0}', space=vmem, size = 0x800, scoped, tag = 'output window, operand 0']
    %11 = vsyncpa [#allocation4], 0
    %s12 = scalar_lea.sflag [#allocation4], 1
    %13 = vsyncpa %s12, 0
    %14 = vsyncpa [#allocation5], 0
    %s15 = scalar_lea.sflag [#allocation5], 1
    %16 = vsyncpa %s15, 0
    loop: start=0, step=1, limit=4
    $region2: #{tpu_custom_call.1} parent=1 // loop_pre_header
      _
    $region3: #{tpu_custom_call.1} parent=1 // loop_header
      %s18 = sphi 0, %s22
      %p19 = scmp.ge.s32.totalorder %s18, 4
      %s28 = sphi 0, %s30
      %s31 = sphi 0, %s28
      %s32 = sphi 0, %s31
      %s48 = sphi 0, %s32
      %s52 = sphi 0, %s52
      %s54 = sphi 0, %s52
      %s55 = sphi 0, %s54
      %s69 = sphi 0, %s55
      %s73 = sphi 0, %s73
      %s75 = sphi 0, %s73
      %s76 = sphi 0, %s75
      %s90 = sphi 0, %s76
      %s94 = sphi 0, %s94
      %s96 = sphi 0, %s94
      %s97 = sphi 0, %s96
      %s111 = sphi 0, %s97
      %s115 = sphi 0, %s115
      %s117 = sphi 0, %s115
      %s118 = sphi 0, %s117
      %s132 = sphi 0, %s118
      %s138 = sphi 0, %s140
      %s141 = sphi 0, %s138
      %s142 = sphi 0, %s141
      %s158 = sphi 0, %s142
    $region4: #{tpu_custom_call.1} parent=1 // loop_header_branch
      %21 = sbr.rel (%p19) target = $region8
    $region5: #{tpu_custom_call.1} parent=1 // loop_body
      %s23 = ssub.s32 %s18, 1
      %s24 = ssub.s32 %s18, 2
      %s25 = sadd.s32 %s18, 1
      %s26 = ssub.s32 %s18, %s25
      %p27 = scmp.eq.s32.totalorder %s26, 0
      %s29 = sadd.s32 %s28, 1
      %s30 = scalar_select %p27, %s28, %s29
      %p33 = pneg %p27
      %p34 = scmp.eq.s32.totalorder %s18, 1
      %p35 = por %p33, %p34
      %p36 = scmp.ne.s32.totalorder %s28, %s31
      %p37 = scmp.eq.s32.totalorder %s18, 0
      %p38 = por %p36, %p37
      %p39 = scmp.ne.s32.totalorder %s28, %s31
      %p40 = scmp.eq.s32.totalorder %s23, 1
      %p41 = por %p39, %p40
      %p42 = scmp.ne.s32.totalorder %s31, %s32
      %p43 = scmp.eq.s32.totalorder %s23, 0
      %p44 = por %p42, %p43
      %p45 = scmp.ne.s32.totalorder %s31, %s32
      %p46 = scmp.eq.s32.totalorder %s24, 1
      %p47 = por %p45, %p46
      %p49 = scmp.ne.s32.totalorder %s32, %s48
      %p50 = scmp.eq.s32.totalorder %s24, 0
      %p51 = por %p49, %p50
      %s53 = sadd.s32 %s52, 1
      %p56 = scmp.eq.s32.totalorder %s18, 1
      %p57 = scmp.ne.s32.totalorder %s52, %s54
      %p58 = scmp.eq.s32.totalorder %s18, 0
      %p59 = por %p57, %p58
      %p60 = scmp.ne.s32.totalorder %s52, %s54
      %p61 = scmp.eq.s32.totalorder %s23, 1
      %p62 = por %p60, %p61
      %p63 = scmp.ne.s32.totalorder %s54, %s55
      %p64 = scmp.eq.s32.totalorder %s23, 0
      %p65 = por %p63, %p64
      %p66 = scmp.ne.s32.totalorder %s54, %s55
      %p67 = scmp.eq.s32.totalorder %s24, 1
      %p68 = por %p66, %p67
      %p70 = scmp.ne.s32.totalorder %s55, %s69
      %p71 = scmp.eq.s32.totalorder %s24, 0
      %p72 = por %p70, %p71
      %s74 = sadd.s32 %s73, 1
      %p77 = scmp.eq.s32.totalorder %s18, 1
      %p78 = scmp.ne.s32.totalorder %s73, %s75
      %p79 = scmp.eq.s32.totalorder %s18, 0
      %p80 = por %p78, %p79
      %p81 = scmp.ne.s32.totalorder %s73, %s75
      %p82 = scmp.eq.s32.totalorder %s23, 1
      %p83 = por %p81, %p82
      %p84 = scmp.ne.s32.totalorder %s75, %s76
      %p85 = scmp.eq.s32.totalorder %s23, 0
      %p86 = por %p84, %p85
      %p87 = scmp.ne.s32.totalorder %s75, %s76
      %p88 = scmp.eq.s32.totalorder %s24, 1
      %p89 = por %p87, %p88
      %p91 = scmp.ne.s32.totalorder %s76, %s90
      %p92 = scmp.eq.s32.totalorder %s24, 0
      %p93 = por %p91, %p92
      %s95 = sadd.s32 %s94, 1
      %p98 = scmp.eq.s32.totalorder %s18, 1
      %p99 = scmp.ne.s32.totalorder %s94, %s96
      %p100 = scmp.eq.s32.totalorder %s18, 0
      %p101 = por %p99, %p100
      %p102 = scmp.ne.s32.totalorder %s94, %s96
      %p103 = scmp.eq.s32.totalorder %s23, 1
      %p104 = por %p102, %p103
      %p105 = scmp.ne.s32.totalorder %s96, %s97
      %p106 = scmp.eq.s32.totalorder %s23, 0
      %p107 = por %p105, %p106
      %p108 = scmp.ne.s32.totalorder %s96, %s97
      %p109 = scmp.eq.s32.totalorder %s24, 1
      %p110 = por %p108, %p109
      %p112 = scmp.ne.s32.totalorder %s97, %s111
      %p113 = scmp.eq.s32.totalorder %s24, 0
      %p114 = por %p112, %p113
      %s116 = sadd.s32 %s115, 1
      %p119 = scmp.eq.s32.totalorder %s18, 1
      %p120 = scmp.ne.s32.totalorder %s115, %s117
      %p121 = scmp.eq.s32.totalorder %s18, 0
      %p122 = por %p120, %p121
      %p123 = scmp.ne.s32.totalorder %s115, %s117
      %p124 = scmp.eq.s32.totalorder %s23, 1
      %p125 = por %p123, %p124
      %p126 = scmp.ne.s32.totalorder %s117, %s118
      %p127 = scmp.eq.s32.totalorder %s23, 0
      %p128 = por %p126, %p127
      %p129 = scmp.ne.s32.totalorder %s117, %s118
      %p130 = scmp.eq.s32.totalorder %s24, 1
      %p131 = por %p129, %p130
      %p133 = scmp.ne.s32.totalorder %s118, %s132
      %p134 = scmp.eq.s32.totalorder %s24, 0
      %p135 = por %p133, %p134
      %s136 = ssub.s32 %s18, %s25
      %p137 = scmp.eq.s32.totalorder %s136, 0
      %s139 = sadd.s32 %s138, 1
      %s140 = scalar_select %p137, %s138, %s139
      %p143 = pneg %p137
      %p144 = scmp.eq.s32.totalorder %s18, 1
      %p145 = por %p143, %p144
      %p146 = scmp.ne.s32.totalorder %s138, %s141
      %p147 = scmp.eq.s32.totalorder %s18, 0
      %p148 = por %p146, %p147
      %p149 = scmp.ne.s32.totalorder %s138, %s141
      %p150 = scmp.eq.s32.totalorder %s23, 1
      %p151 = por %p149, %p150
      %p152 = scmp.ne.s32.totalorder %s141, %s142
      %p153 = scmp.eq.s32.totalorder %s23, 0
      %p154 = por %p152, %p153
      %p155 = scmp.ne.s32.totalorder %s141, %s142
      %p156 = scmp.eq.s32.totalorder %s24, 1
      %p157 = por %p155, %p156
      %p159 = scmp.ne.s32.totalorder %s142, %s158
      %p160 = scmp.eq.s32.totalorder %s24, 0
      %p161 = por %p159, %p160
      %p162 = scmp.le.s32.totalorder 1, %s18
      %p163 = scmp.lt.s32.totalorder %s18, 3
      %p164 = pnand %p162, %p163
      %p165 = pneg %p164
      // Predicated region
      $region9: #{tpu_custom_call.1} parent=5 // pred_check
        _
      $region10: #{tpu_custom_call.1} parent=5 // pred_check_branch
        %167 = sbr.rel (%p164) target = $region12
      $region11: #{tpu_custom_call.1} parent=5 // pred_region
        %s168 = ssub.s32 %s18, 1
        // Predicated region
        $region13: #{tpu_custom_call.1} parent=11 // pred_check
          %p169 = pneg %p65
        $region14: #{tpu_custom_call.1} parent=11 // pred_check_branch
          %171 = sbr.rel (%p169) target = $region16
        $region15: #{tpu_custom_call.1} parent=11 // pred_region
          _
        $region16: #{tpu_custom_call.1} parent=11 // pred_fallthru
          _
        // Predicated region
        $region17: #{tpu_custom_call.1} parent=11 // pred_check
          %p172 = pneg %p86
        $region18: #{tpu_custom_call.1} parent=11 // pred_check_branch
          %174 = sbr.rel (%p172) target = $region20
        $region19: #{tpu_custom_call.1} parent=11 // pred_region
          _
        $region20: #{tpu_custom_call.1} parent=11 // pred_fallthru
          _
        // Predicated region
        $region21: #{tpu_custom_call.1} parent=11 // pred_check
          %p175 = pneg %p107
        $region22: #{tpu_custom_call.1} parent=11 // pred_check_branch
          %177 = sbr.rel (%p175) target = $region24
        $region23: #{tpu_custom_call.1} parent=11 // pred_region
          _
        $region24: #{tpu_custom_call.1} parent=11 // pred_fallthru
          _
        // Predicated region
        $region25: #{tpu_custom_call.1} parent=11 // pred_check
          %p178 = pneg %p128
        $region26: #{tpu_custom_call.1} parent=11 // pred_check_branch
          %180 = sbr.rel (%p178) target = $region28
        $region27: #{tpu_custom_call.1} parent=11 // pred_region
          _
        $region28: #{tpu_custom_call.1} parent=11 // pred_fallthru
          _
      $region12: #{tpu_custom_call.1} parent=5 // pred_fallthru
        _
      %p181 = scmp.lt.s32.totalorder %s18, 2
      // Predicated region
      $region29: #{tpu_custom_call.1} parent=5 // pred_check
        %p182 = pneg %p181
      $region30: #{tpu_custom_call.1} parent=5 // pred_check_branch
        %184 = sbr.rel (%p182) target = $region32
      $region31: #{tpu_custom_call.1} parent=5 // pred_region
        // Predicated region
        $region33: #{tpu_custom_call.1} parent=31 // pred_check
          %p185 = pneg %p38
        $region34: #{tpu_custom_call.1} parent=31 // pred_check_branch
          %187 = sbr.rel (%p185) target = $region36
        $region35: #{tpu_custom_call.1} parent=31 // pred_region
          %s188 = sand.u32 %s28, 1
          %s189 = scalar_lea.sflag [#allocation4], %s188
          %s190 = sand.u32 %s28, 1
          %s191 = smul.addr %s190, 576
          %s192 = scalar_lea.vmem [#allocation3], %s191
          %194 = vsyncadd %s189, 0
          %s195 = smul.addr %s18, 72
          %s196 = smul.addr %s195, 8
          %s197 = scalar_lea.hbm %s0, %s196
          %s198 = sshll.u32 %s197, 4
          %s199 = int_to_ptr.hbm [resolvable:$true] %s198
          %s200 = sshll.u32 %s192, 4
          %s201 = int_to_ptr.vmem [resolvable:$true] %s200
          %206 = dma.hbm_to_vmem [thread:$0]  %s199, 9216, %s201, %s189, 256, 256, 16
        $region36: #{tpu_custom_call.1} parent=31 // pred_fallthru
          _
      $region32: #{tpu_custom_call.1} parent=5 // pred_fallthru
        _
      %p207 = scmp.le.s32.totalorder 1, %s18
      %p208 = scmp.lt.s32.totalorder %s18, 3
      %p209 = pnand %p207, %p208
      %p210 = pneg %p209
      // Predicated region
      $region37: #{tpu_custom_call.1} parent=5 // pred_check
        _
      $region38: #{tpu_custom_call.1} parent=5 // pred_check_branch
        %212 = sbr.rel (%p209) target = $region40
      $region39: #{tpu_custom_call.1} parent=5 // pred_region
        %s213 = ssub.s32 %s18, 1
        %s214 = sand.u32 %s31, 1
        %s215 = scalar_lea.sflag [#allocation4], %s214
        %s216 = sand.u32 %s31, 1
        %s217 = smul.addr %s216, 576
        %s218 = scalar_lea.vmem [#allocation3], %s217
        // Predicated region
        $region41: #{tpu_custom_call.1} parent=39 // pred_check
          %p219 = pneg %p44
        $region42: #{tpu_custom_call.1} parent=39 // pred_check_branch
          %221 = sbr.rel (%p219) target = $region44
        $region43: #{tpu_custom_call.1} parent=39 // pred_region
          %223 = dma.done %s215, 9216
        $region44: #{tpu_custom_call.1} parent=39 // pred_fallthru
          _
        %s224 = sand.u32 %s31, 1
        %s225 = scalar_lea.sflag [#allocation4], %s224
        %s226 = sand.u32 %s31, 1
        %s227 = smul.addr %s226, 576
        %s228 = scalar_lea.vmem [#allocation3], %s227
        %p229 = pneg %p44
        %p230 = pneg %p41
        %p231 = pneg %p65
        %p232 = pneg %p62
        %p233 = pneg %p86
        %p234 = pneg %p83
        %p235 = pneg %p107
        %p236 = pneg %p104
        %p237 = pneg %p128
        %p238 = pneg %p125
        %p239 = pneg %p154
        %p240 = pneg %p151
        %s241 = sand.u32 %s141, 1
        %s242 = scalar_lea.sflag [#allocation5], %s241
        %s243 = sand.u32 %s141, 1
        %s244 = smul.addr %s243, 2
        %s245 = scalar_lea.vmem [#allocation6], %s244
        %v246 = vld [vmem:[%s1] sm:$0xff]
        %v247 = vld [vmem:[%s1 + $0x8] sm:$0xff]
        %v248 = vld [vmem:[%s1 + $0x10] sm:$0xff]
        %v249 = vld [vmem:[%s2] sm:$0xff]
        %v250 = vld [vmem:[%s2 + $0x8] sm:$0xff]
        %v251 = vld [vmem:[%s218] sm:$0xff]
        %v252 = vld [vmem:[%s218 + $0x8] sm:$0xff]
        %v253 = vld [vmem:[%s218 + $0x10] sm:$0xff]
        %v254 = vld [vmem:[%s218 + $0x18] sm:$0xff]
        %v255 = vld [vmem:[%s218 + $0x20] sm:$0xff]
        %v256 = vld [vmem:[%s218 + $0x28] sm:$0xff]
        %v257 = vld [vmem:[%s218 + $0x30] sm:$0xff]
        %v258 = vld [vmem:[%s218 + $0x38] sm:$0xff]
        %v259 = vld [vmem:[%s218 + $0x40] sm:$0xff]
        %v260 = vld [vmem:[%s218 + $0x48] sm:$0xff]
        %v261 = vld [vmem:[%s218 + $0x50] sm:$0xff]
        %v262 = vld [vmem:[%s218 + $0x58] sm:$0xff]
        %v263 = vld [vmem:[%s218 + $0x60] sm:$0xff]
        %v264 = vld [vmem:[%s218 + $0x68] sm:$0xff]
        %v265 = vld [vmem:[%s218 + $0x70] sm:$0xff]
        %v266 = vld [vmem:[%s218 + $0x78] sm:$0xff]
        %v267 = vld [vmem:[%s218 + $0x80] sm:$0xff]
        %v268 = vld [vmem:[%s218 + $0x88] sm:$0xff]
        %v269 = vld [vmem:[%s218 + $0x90] sm:$0xff]
        %v270 = vld [vmem:[%s218 + $0x98] sm:$0xff]
        %v271 = vld [vmem:[%s218 + $0xa0] sm:$0xff]
        %v272 = vld [vmem:[%s218 + $0xa8] sm:$0xff]
        %v273 = vld [vmem:[%s218 + $0xb0] sm:$0xff]
        %v274 = vld [vmem:[%s218 + $0xb8] sm:$0xff]
        %v275 = vld [vmem:[%s218 + $0xc0] sm:$0xff]
        %v276 = vld [vmem:[%s218 + $0xc8] sm:$0xff]
        %v277 = vld [vmem:[%s218 + $0xd0] sm:$0xff]
        %v278 = vld [vmem:[%s218 + $0xd8] sm:$0xff]
        %v279 = vld [vmem:[%s218 + $0xe0] sm:$0xff]
        %v280 = vld [vmem:[%s218 + $0xe8] sm:$0xff]
        %v281 = vld [vmem:[%s218 + $0xf0] sm:$0xff]
        %v282 = vld [vmem:[%s218 + $0xf8] sm:$0xff]
        %v283 = vld [vmem:[%s218 + $0x100] sm:$0xff]
        %v284 = vld [vmem:[%s218 + $0x108] sm:$0xff]
        %v285 = vld [vmem:[%s218 + $0x110] sm:$0xff]
        %v286 = vld [vmem:[%s218 + $0x118] sm:$0xff]
        %v287 = vld [vmem:[%s218 + $0x120] sm:$0xff]
        %v288 = vld [vmem:[%s218 + $0x128] sm:$0xff]
        %v289 = vld [vmem:[%s218 + $0x130] sm:$0xff]
        %v290 = vld [vmem:[%s218 + $0x138] sm:$0xff]
        %v291 = vld [vmem:[%s218 + $0x140] sm:$0xff]
        %v292 = vld [vmem:[%s218 + $0x148] sm:$0xff]
        %v293 = vld [vmem:[%s218 + $0x150] sm:$0xff]
        %v294 = vld [vmem:[%s218 + $0x158] sm:$0xff]
        %v295 = vld [vmem:[%s218 + $0x160] sm:$0xff]
        %v296 = vld [vmem:[%s218 + $0x168] sm:$0xff]
        %v297 = vld [vmem:[%s218 + $0x170] sm:$0xff]
        %v298 = vld [vmem:[%s218 + $0x178] sm:$0xff]
        %v299 = vld [vmem:[%s218 + $0x180] sm:$0xff]
        %v300 = vld [vmem:[%s218 + $0x188] sm:$0xff]
        %v301 = vld [vmem:[%s218 + $0x190] sm:$0xff]
        %v302 = vld [vmem:[%s218 + $0x198] sm:$0xff]
        %v303 = vld [vmem:[%s218 + $0x1a0] sm:$0xff]
        %v304 = vld [vmem:[%s218 + $0x1a8] sm:$0xff]
        %v305 = vld [vmem:[%s218 + $0x1b0] sm:$0xff]
        %v306 = vld [vmem:[%s218 + $0x1b8] sm:$0xff]
        %v307 = vld [vmem:[%s218 + $0x1c0] sm:$0xff]
        %v308 = vld [vmem:[%s218 + $0x1c8] sm:$0xff]
        %v309 = vld [vmem:[%s218 + $0x1d0] sm:$0xff]
        %v310 = vld [vmem:[%s218 + $0x1d8] sm:$0xff]
        %v311 = vld [vmem:[%s218 + $0x1e0] sm:$0xff]
        %v312 = vld [vmem:[%s218 + $0x1e8] sm:$0xff]
        %v313 = vld [vmem:[%s218 + $0x1f0] sm:$0xff]
        %v314 = vld [vmem:[%s218 + $0x1f8] sm:$0xff]
        %v315 = vld [vmem:[%s218 + $0x200] sm:$0xff]
        %v316 = vld [vmem:[%s218 + $0x208] sm:$0xff]
        %v317 = vld [vmem:[%s218 + $0x210] sm:$0xff]
        %v318 = vld [vmem:[%s218 + $0x218] sm:$0xff]
        %v319 = vld [vmem:[%s218 + $0x220] sm:$0xff]
        %v320 = vld [vmem:[%s218 + $0x228] sm:$0xff]
        %v321 = vld [vmem:[%s218 + $0x230] sm:$0xff]
        %v322 = vld [vmem:[%s218 + $0x238] sm:$0xff]
        %vm323 = vcmask 261120
        %v325 = vsel %vm323, %v248, 0
        %327 = vmatpush.msra.mxu0 %v281
        %328 = vmatpush.msra.mxu0 %v279
        %329 = vmatpush.msra.mxu0 %v277
        %330 = vmatpush.msra.mxu0 %v275
        %331 = vmatpush.msra.mxu0 %v273
        %332 = vmatpush.msra.mxu0 %v271
        %333 = vmatpush.msra.mxu0 %v269
        %334 = vmatpush.msra.mxu0 %v267
        %335 = vmatpush.msra.mxu0 %v265
        %336 = vmatpush.msra.mxu0 %v263
        %337 = vmatpush.msra.mxu0 %v261
        %338 = vmatpush.msra.mxu0 %v259
        %339 = vmatpush.msra.mxu0 %v257
        %340 = vmatpush.msra.mxu0 %v255
        %341 = vmatpush.msra.mxu0 %v253
        %342 = vmatpush.msra.mxu0 %v251
        %343 = vmatmul.f32.gmra.mxu0 %v246
        %v344 = vpop.f32.mrf.mxu0
        %v345 = vadd.f32 0.0, %v344
        %346 = vdwg.mxu0
        %347 = vmatpush.msra.mxu0 %v313
        %348 = vmatpush.msra.mxu0 %v311
        %349 = vmatpush.msra.mxu0 %v309
        %350 = vmatpush.msra.mxu0 %v307
        %351 = vmatpush.msra.mxu0 %v305
        %352 = vmatpush.msra.mxu0 %v303
        %353 = vmatpush.msra.mxu0 %v301
        %354 = vmatpush.msra.mxu0 %v299
        %355 = vmatpush.msra.mxu0 %v297
        %356 = vmatpush.msra.mxu0 %v295
        %357 = vmatpush.msra.mxu0 %v293
        %358 = vmatpush.msra.mxu0 %v291
        %359 = vmatpush.msra.mxu0 %v289
        %360 = vmatpush.msra.mxu0 %v287
        %361 = vmatpush.msra.mxu0 %v285
        %362 = vmatpush.msra.mxu0 %v283
        %363 = vmatmul.f32.gmra.mxu0 %v247
        %v364 = vpop.f32.mrf.mxu0
        %v365 = vadd.f32 %v345, %v364
        %366 = vdwg.mxu0
        %367 = vmatpush.msra.mxu0 0.0
        %368 = vmatpush.msra.mxu0 0.0
        %369 = vmatpush.msra.mxu0 0.0
        %370 = vmatpush.msra.mxu0 0.0
        %371 = vmatpush.msra.mxu0 0.0
        %372 = vmatpush.msra.mxu0 0.0
        %373 = vmatpush.msra.mxu0 0.0
        %374 = vmatpush.msra.mxu0 0.0
        %375 = vmatpush.msra.mxu0 0.0
        %376 = vmatpush.msra.mxu0 0.0
        %377 = vmatpush.msra.mxu0 0.0
        %378 = vmatpush.msra.mxu0 0.0
        %379 = vmatpush.msra.mxu0 %v321
        %380 = vmatpush.msra.mxu0 %v319
        %381 = vmatpush.msra.mxu0 %v317
        %382 = vmatpush.msra.mxu0 %v315
        %383 = vmatmul.f32.gmra.mxu0 %v325
        %v384 = vpop.f32.mrf.mxu0
        %v385 = vadd.f32 %v365, %v384
        %386 = vdwg.mxu0
        %387 = vmatpush.msra.mxu0 %v282
        %388 = vmatpush.msra.mxu0 %v280
        %389 = vmatpush.msra.mxu0 %v278
        %390 = vmatpush.msra.mxu0 %v276
        %391 = vmatpush.msra.mxu0 %v274
        %392 = vmatpush.msra.mxu0 %v272
        %393 = vmatpush.msra.mxu0 %v270
        %394 = vmatpush.msra.mxu0 %v268
        %395 = vmatpush.msra.mxu0 %v266
        %396 = vmatpush.msra.mxu0 %v264
        %397 = vmatpush.msra.mxu0 %v262
        %398 = vmatpush.msra.mxu0 %v260
        %399 = vmatpush.msra.mxu0 %v258
        %400 = vmatpush.msra.mxu0 %v256
        %401 = vmatpush.msra.mxu0 %v254
        %402 = vmatpush.msra.mxu0 %v252
        %403 = vmatmul.f32.gmra.mxu0 %v246
        %v404 = vpop.f32.mrf.mxu0
        %v405 = vadd.f32 0.0, %v404
        %406 = vdwg.mxu0
        %407 = vmatpush.msra.mxu0 %v314
        %408 = vmatpush.msra.mxu0 %v312
        %409 = vmatpush.msra.mxu0 %v310
        %410 = vmatpush.msra.mxu0 %v308
        %411 = vmatpush.msra.mxu0 %v306
        %412 = vmatpush.msra.mxu0 %v304
        %413 = vmatpush.msra.mxu0 %v302
        %414 = vmatpush.msra.mxu0 %v300
        %415 = vmatpush.msra.mxu0 %v298
        %416 = vmatpush.msra.mxu0 %v296
        %417 = vmatpush.msra.mxu0 %v294
        %418 = vmatpush.msra.mxu0 %v292
        %419 = vmatpush.msra.mxu0 %v290
        %420 = vmatpush.msra.mxu0 %v288
        %421 = vmatpush.msra.mxu0 %v286
        %422 = vmatpush.msra.mxu0 %v284
        %423 = vmatmul.f32.gmra.mxu0 %v247
        %v424 = vpop.f32.mrf.mxu0
        %v425 = vadd.f32 %v405, %v424
        %426 = vdwg.mxu0
        %427 = vmatpush.msra.mxu0 0.0
        %428 = vmatpush.msra.mxu0 0.0
        %429 = vmatpush.msra.mxu0 0.0
        %430 = vmatpush.msra.mxu0 0.0
        %431 = vmatpush.msra.mxu0 0.0
        %432 = vmatpush.msra.mxu0 0.0
        %433 = vmatpush.msra.mxu0 0.0
        %434 = vmatpush.msra.mxu0 0.0
        %435 = vmatpush.msra.mxu0 0.0
        %436 = vmatpush.msra.mxu0 0.0
        %437 = vmatpush.msra.mxu0 0.0
        %438 = vmatpush.msra.mxu0 0.0
        %439 = vmatpush.msra.mxu0 %v322
        %440 = vmatpush.msra.mxu0 %v320
        %441 = vmatpush.msra.mxu0 %v318
        %442 = vmatpush.msra.mxu0 %v316
        %443 = vmatmul.f32.gmra.mxu0 %v325
        %v444 = vpop.f32.mrf.mxu0
        %v445 = vadd.f32 %v425, %v444
        %446 = vdwg.mxu0
        %v447 = vadd.f32 %v385, %v445
        %448 = vadd.xlane.f32.xlu0 %v447
        %v449 = vpop.xlane.xlu0 %448
        %v450 = vmul.f32 %v449, 0.00390625
        %v451 = vsub.f32 %v385, %v450
        %v452 = vsub.f32 %v445, %v450
        %v453 = vmul.f32 %v451, %v451
        %v454 = vmul.f32 %v452, %v452
        %v455 = vadd.f32 %v453, %v454
        %456 = vadd.xlane.f32.xlu0 %v455
        %v457 = vpop.xlane.xlu0 %456
        %v458 = vmul.f32 %v457, 0.00390625
        %v459 = vadd.f32 %v458, 1e-05
        %v460 = vrsqrt.pop %v459
        %v461 = vmul.f32 %v460, %v459
        %v462 = vmul.f32 %v461, %v460
        %v463 = vmul.f32 0.5, %v462
        %v464 = vsub.f32 1.5, %v463
        %v465 = vmul.f32 %v460, %v464
        %vm466 = vweird.f32 %v459
        %vm467 = vweird.f32 %v460
        %vm468 = vmor %vm466, %vm467
        %v469 = vsel %vm468, %v460, %v465
        %v470 = vmul.f32 %v469, %v249
        %v471 = vmul.f32 %v450, %v470
        %v472 = vsub.f32 %v250, %v471
        %474 = vset.pattern.permute.xlu0 0
        %475 = vperm.xlu0 %474, %v470
        %v476 = vpop.permute.xlu0 %475
        %v478 = vmul.f32 %v385, %v476
        %v479 = vmul.f32 %v445, %v476
        %481 = vset.pattern.permute.xlu0 0
        %482 = vperm.xlu0 %481, %v472
        %v483 = vpop.permute.xlu0 %482
        %v485 = vadd.f32 %v478, %v483
        %v486 = vadd.f32 %v479, %v483
        %v487 = vmax.f32 %v485, 0.0
        %v488 = vmax.f32 %v486, 0.0
        %v489 = vld [vmem:[%s3] sm:$0xff]
        %491 = vset.pattern.permute.xlu0 0
        %492 = vperm.xlu0 %491, %v489
        %v493 = vpop.permute.xlu0 %492
        %v495 = vmul.f32 %v487, %v493
        %v496 = vmul.f32 %v488, %v493
        %v497 = vrot.slane %v495, 4
        %v498 = vadd.f32 %v495, %v497
        %v499 = vrot.slane %v498, 2
        %v500 = vadd.f32 %v498, %v499
        %v501 = vrot.slane %v500, 1
        %v502 = vadd.f32 %v500, %v501
        %v503 = vrot.slane %v496, 4
        %v504 = vadd.f32 %v496, %v503
        %v505 = vrot.slane %v504, 2
        %v506 = vadd.f32 %v504, %v505
        %v507 = vrot.slane %v506, 1
        %v508 = vadd.f32 %v506, %v507
        %s509 = sld [smem:[#allocation2]]
        %v510 = vstv %s509
        %v511 = vadd.f32 %v502, %v510
        %v512 = vadd.f32 %v508, %v510
        %v515 = vrot.slane %v512, 7
        %vm516 = vcmask 1040384
        %v517 = vsel %vm516, %v511, %v515
        %v519 = vlaneseq
        %vm520 = vcmp.ge.s32.totalorder %v519, 0
        %vm521 = vcmp.lt.s32.totalorder %v519, 256
        %vm522 = vmand %vm520, %vm521
        %523 = vst.msk [vmem:[%s245] sm:$0x3] %vm522, %v517
        %s524 = sand.u32 %s141, 1
        %s525 = scalar_lea.sflag [#allocation5], %s524
        %s526 = sand.u32 %s141, 1
        %s527 = smul.addr %s526, 2
        %s528 = scalar_lea.vmem [#allocation6], %s527
        // Predicated region
        $region45: #{tpu_custom_call.1} parent=39 // pred_check
          %p529 = pneg %p151
        $region46: #{tpu_custom_call.1} parent=39 // pred_check_branch
          %531 = sbr.rel (%p529) target = $region48
        $region47: #{tpu_custom_call.1} parent=39 // pred_region
          %533 = vsyncadd %s525, 0
          %s534 = smul.addr %s23, 2
          %s535 = scalar_lea.hbm %s5, %s534
          %s537 = sshll.u32 %s528, 4
          %s538 = int_to_ptr.vmem [resolvable:$true] %s537
          %s539 = sshll.u32 %s535, 4
          %s540 = int_to_ptr.hbm [resolvable:$true] %s539
          %542 = dma.vmem_to_hbm [thread:$0]  %s538, 32, %s540, %s525
        $region48: #{tpu_custom_call.1} parent=39 // pred_fallthru
          _
      $region40: #{tpu_custom_call.1} parent=5 // pred_fallthru
        _
      %p543 = scmp.le.s32.totalorder 2, %s18
      // Predicated region
      $region49: #{tpu_custom_call.1} parent=5 // pred_check
        %p544 = pneg %p543
      $region50: #{tpu_custom_call.1} parent=5 // pred_check_branch
        %546 = sbr.rel (%p544) target = $region52
      $region51: #{tpu_custom_call.1} parent=5 // pred_region
        %s547 = ssub.s32 %s18, 2
        // Predicated region
        $region53: #{tpu_custom_call.1} parent=51 // pred_check
          %p548 = pneg %p157
        $region54: #{tpu_custom_call.1} parent=51 // pred_check_branch
          %550 = sbr.rel (%p548) target = $region56
        $region55: #{tpu_custom_call.1} parent=51 // pred_region
          %s551 = sand.u32 %s142, 1
          %s552 = scalar_lea.sflag [#allocation5], %s551
          %s553 = sand.u32 %s142, 1
          %s554 = smul.addr %s553, 2
          %s555 = scalar_lea.vmem [#allocation6], %s554
          %557 = dma.done %s552, 32
        $region56: #{tpu_custom_call.1} parent=51 // pred_fallthru
          _
      $region52: #{tpu_custom_call.1} parent=5 // pred_fallthru
        _
    $region6: #{tpu_custom_call.1} parent=1 // loop_footer
      %s22 = sadd.s32 1, %s18
    $region7: #{tpu_custom_call.1} parent=1 // loop_footer_branch
      %17 = sbr.rel target = $region3
    $region8: #{tpu_custom_call.1} parent=1 // loop_exit
      _
    %558 = vsyncpa [#allocation4], 1
    %s559 = scalar_lea.sflag [#allocation4], 1
    %560 = vsyncpa %s559, 1
    %561 = vsyncpa [#allocation5], 1
    %s562 = scalar_lea.sflag [#allocation5], 1
    %563 = vsyncpa %s562, 1

</llo_original>
